<compile_context>
chip_gen: v6e
topology: v6e:2x2x1
jax: 0.10.0
libtpu: 0.0.40
codegen_flags: <defaults>
</compile_context>

<pallas_src>
import functools

import jax
import jax.numpy as jnp
import numpy as np
from jax.experimental import pallas as pl
from jax.experimental.pallas import tpu as pltpu


# ----------------------------------------------------------------------------
# Pallas kernel: one affine map per row tile
# ----------------------------------------------------------------------------
def _critic_kernel(x_ref, r_ref, w_ref, wr_ref, b_ref, out_ref):
    # (row_tile, F) @ (F, h_last) on the MXU, f32 accumulate.
    x = x_ref[...].astype(jnp.float32)
    h = jnp.dot(x, w_ref[...], preferred_element_type=jnp.float32)
    # Fused reward column (rank-1) + bias, f32 on the VPU.
    h = h + r_ref[...].astype(jnp.float32) * wr_ref[...] + b_ref[...]
    out_ref[...] = h.astype(out_ref.dtype)


def _round_up(x, m):
    return ((x + m - 1) // m) * m


def _vmem_capacity_bytes():
    """Per-generation VMEM capacity; conservative (v7x) fallback."""
    try:
        return int(pltpu.get_tpu_info().vmem_capacity_bytes)
    except Exception:
        return 64 * 1024 * 1024


def _pick_row_tile(rows, bytes_per_row_dbl_buf, target, stream_budget_bytes):
    """Row tile: large (overhead-amortizing), sublane-aligned, >=2 grid steps
    when possible (v7x megacore), and within the streaming VMEM budget."""
    target = max(8, (target // 8) * 8)
    # Keep at least 2 grid steps so the single "parallel" axis can be sharded
    # across v7x's 2 TensorCores.
    tile = min(target, _round_up(pl.cdiv(rows, 2), 8))
    tile = max(tile, 8)
    # VMEM budget for the double-buffered streaming blocks (x + r + out).
    max_tile = max(8, (stream_budget_bytes // max(bytes_per_row_dbl_buf, 1)) // 8 * 8)
    return min(tile, max_tile)


# ----------------------------------------------------------------------------
# Offline collapse of the whole affine chain (one-time param prep)
# ----------------------------------------------------------------------------
def collapse_params(params):
    """Fold 1e6 scale + embedding + all fc layers into a single affine map."""
    we, be = params["we"], params["be"]          # (F, E), (1, E)
    w1a, w1r, b1 = params["w1a"], params["w1r"], params["b1"]

    a = (1e6 * we) @ w1a                         # (F, H1)  -- 1e6 folded in
    r = w1r                                      # (1, H1)
    b = be @ w1a + b1                            # (1, H1)
    for (w_l, b_l) in params["fc"]:
        a = a @ w_l
        r = r @ w_l
        b = b @ w_l + b_l
    return (a.astype(jnp.float32),
            r.astype(jnp.float32),
            b.astype(jnp.float32))


# ----------------------------------------------------------------------------
# Wrapper
# ----------------------------------------------------------------------------
@functools.partial(jax.jit, static_argnames=("row_tile", "out_dtype"))
def critic_2_feature_forward(channel_matrix, reward_array,
                             w_total, wr_total, b_total,
                             *, row_tile=8192, out_dtype=jnp.float32):
    """Pallas implementation of Critic_2_feature.forward (collapsed affine).

    channel_matrix: (B, N, F)
    reward_array:   (B, N, 1)
    w_total:  (F, h_last)   collapsed input weight (1e6 scale folded in)
    wr_total: (1, h_last)   collapsed reward weight
    b_total:  (1, h_last)   collapsed bias
    out_dtype: output dtype (e.g. jnp.bfloat16 on v5e to cut store traffic);
               all accumulation stays f32.
    """
    B, N, F = channel_matrix.shape
    h_last = w_total.shape[1]
    rows = B * N

    # No wrapper-side padding or dtype casts: x / r stream through untouched;
    # the ragged trailing block (if any) is masked by Pallas.
    x = channel_matrix.reshape(rows, F)
    r = reward_array.reshape(rows, 1)

    out_itemsize = jnp.dtype(out_dtype).itemsize
    bytes_per_row = (F * x.dtype.itemsize
                     + r.dtype.itemsize
                     + h_last * out_itemsize)

    vmem_cap = _vmem_capacity_bytes()
    vmem_limit = int(min(vmem_cap // 2, 64 * 1024 * 1024))   # 64 MiB v5e/v6e, 32 MiB v7x
    tile = _pick_row_tile(rows, 2 * bytes_per_row, row_tile, vmem_limit // 2)

    grid = (pl.cdiv(rows, tile),)

    in_specs = [
        pl.BlockSpec((tile, F), lambda i: (i, 0)),        # x tile (streamed)
        pl.BlockSpec((tile, 1), lambda i: (i, 0)),        # reward tile (streamed)
        # Index-invariant blocks: Pallas keeps them resident (no re-DMA); tiny.
        pl.BlockSpec((F, h_last), lambda i: (0, 0)),      # W_total
        pl.BlockSpec((1, h_last), lambda i: (0, 0)),      # w_r_total
        pl.BlockSpec((1, h_last), lambda i: (0, 0)),      # b_total
    ]
    out_specs = pl.BlockSpec((tile, h_last), lambda i: (i, 0))

    cost = pl.CostEstimate(
        flops=2 * rows * F * h_last + 3 * rows * h_last,
        transcendentals=0,
        bytes_accessed=rows * bytes_per_row + (F * h_last + 2 * h_last) * 4,
    )

    out = pl.pallas_call(
        _critic_kernel,
        out_shape=jax.ShapeDtypeStruct((rows, h_last), out_dtype),
        grid_spec=pltpu.PrefetchScalarGridSpec(
            num_scalar_prefetch=0,
            grid=grid,
            in_specs=in_specs,
            out_specs=out_specs,
        ),
        compiler_params=pltpu.CompilerParams(
            dimension_semantics=("parallel",),   # row axis -> megacore / 2 TCs
            vmem_limit_bytes=vmem_limit,
        ),
        cost_estimate=cost,
    )(x, r,
      w_total.astype(jnp.float32),
      wr_total.astype(jnp.float32),
      b_total.astype(jnp.float32))

    return out.reshape(B, N, h_last)


# ----------------------------------------------------------------------------
# Deterministic parameter init (matches the shapes created in __init__)
# ----------------------------------------------------------------------------
def init_params(key, flatten_dim, embedding_dim, hidden_dims):
    def linear_init(k, fan_in, fan_out):
        # PyTorch nn.Linear default: U(-1/sqrt(fan_in), 1/sqrt(fan_in))
        kw, kb = jax.random.split(k)
        bound = 1.0 / np.sqrt(fan_in)
        w = jax.random.uniform(kw, (fan_in, fan_out), jnp.float32, -bound, bound)
        b = jax.random.uniform(kb, (1, fan_out), jnp.float32, -bound, bound)
        return w, b

    keys = jax.random.split(key, 1 + len(hidden_dims))

    we, be = linear_init(keys[0], flatten_dim, embedding_dim)

    # first fc layer takes embedding_dim + 1 inputs (embedding + reward)
    w1_full, b1 = linear_init(keys[1], embedding_dim + 1, hidden_dims[0])
    w1a = w1_full[:embedding_dim, :]
    w1r = w1_full[embedding_dim:embedding_dim + 1, :]

    fc = []
    in_dim = hidden_dims[0]
    for layer in range(1, len(hidden_dims)):
        w_l, b_l = linear_init(keys[1 + layer], in_dim, hidden_dims[layer])
        fc.append((w_l, b_l))
        in_dim = hidden_dims[layer]

    return {"we": we, "be": be, "w1a": w1a, "w1r": w1r, "b1": b1,
            "fc": tuple(fc)}


# ----------------------------------------------------------------------------
# Pure-JAX reference (layer-by-layer, mirrors the PyTorch forward)
# ----------------------------------------------------------------------------
def reference_forward(channel_matrix, reward_array, params):
    x = 1e6 * channel_matrix
    emb = x @ params["we"] + params["be"][0]
    fc_data = jnp.concatenate([emb, reward_array], axis=2)
    w1 = jnp.concatenate([params["w1a"], params["w1r"]], axis=0)
    fc_data = fc_data @ w1 + params["b1"][0]
    for (w_l, b_l) in params["fc"]:
        fc_data = fc_data @ w_l + b_l[0]
    return fc_data


# ----------------------------------------------------------------------------
if __name__ == "__main__":
    # Small shapes implied by the forward: 3-D channel_matrix, reward on dim 2.
    B, N = 2, 8                 # batch, "agents"/sequence dim
    flatten_dim = 32            # args.flatten_dim
    embedding_dim = 16          # args.embedding_dim
    hidden_dims = (32, 16)      # args.hidden_dim, args.fc_layer_number = 2

    key = jax.random.PRNGKey(0)
    k_cm, k_rw, k_p = jax.random.split(key, 3)

    # channel matrices are tiny values in the original use case → scale down
    channel_matrix = jax.random.normal(k_cm, (B, N, flatten_dim), jnp.float32) * 1e-6
    reward_array = jax.random.normal(k_rw, (B, N, 1), jnp.float32)

    params = init_params(k_p, flatten_dim, embedding_dim, hidden_dims)

    # One-time offline collapse of the affine chain.
    w_total, wr_total, b_total = collapse_params(params)

    out = critic_2_feature_forward(channel_matrix, reward_array,
                                   w_total, wr_total, b_total)
    out = jax.block_until_ready(out)

    ref = reference_forward(channel_matrix, reward_array, params)
    assert out.shape == (B, N, hidden_dims[-1])
    np.testing.assert_allclose(np.asarray(out), np.asarray(ref),
                               rtol=1e-4, atol=1e-4)

    print("KERNEL_OK")
</pallas_src>

<mosaic_0001>
module attributes {stable_mosaic.version = 11 : i64} {
  func.func @_critic_kernel(%arg0: i32, %arg1: memref<8x32xf32, #tpu.memory_space<vmem>>, %arg2: memref<8x1xf32, #tpu.memory_space<vmem>>, %arg3: memref<32x16xf32, #tpu.memory_space<vmem>>, %arg4: memref<1x16xf32, #tpu.memory_space<vmem>>, %arg5: memref<1x16xf32, #tpu.memory_space<vmem>>, %arg6: memref<8x16xf32, #tpu.memory_space<vmem>>) attributes {dimension_semantics = [#tpu.dimension_semantics<parallel>], iteration_bounds = array<i64: 2>, scalar_prefetch = 0 : i64, scratch_operands = 0 : i64, tpu.core_type = #tpu.core_type<tc>, window_params = [{transform_indices = @transform_0, window_bounds = array<i64: 8, 32>}, {transform_indices = @transform_1, window_bounds = array<i64: 8, 1>}, {pipeline_mode = #tpu.pipeline_mode<synchronous>, transform_indices = @transform_2, window_bounds = array<i64: 32, 16>}, {pipeline_mode = #tpu.pipeline_mode<synchronous>, transform_indices = @transform_3, window_bounds = array<i64: 1, 16>}, {pipeline_mode = #tpu.pipeline_mode<synchronous>, transform_indices = @transform_4, window_bounds = array<i64: 1, 16>}, {transform_indices = @transform_5, window_bounds = array<i64: 8, 16>}]} {
    %c0 = arith.constant 0 : index
    %c0_0 = arith.constant 0 : index
    %0 = vector.load %arg1[%c0, %c0_0] : memref<8x32xf32, #tpu.memory_space<vmem>>, vector<8x32xf32>
    %c0_1 = arith.constant 0 : index
    %c0_2 = arith.constant 0 : index
    %1 = vector.load %arg3[%c0_1, %c0_2] : memref<32x16xf32, #tpu.memory_space<vmem>>, vector<32x16xf32>
    %cst = arith.constant dense<0.000000e+00> : vector<8x16xf32>
    %2 = tpu.matmul %0, %1, %cst {dimension_numbers = #tpu.dot_dimension_numbers<[1], [0], [0], [1], [0, 0, 1, 1], [], []>} : vector<8x32xf32>, vector<32x16xf32>, vector<8x16xf32> -> vector<8x16xf32>
    %c0_3 = arith.constant 0 : index
    %c0_4 = arith.constant 0 : index
    %3 = vector.load %arg2[%c0_3, %c0_4] : memref<8x1xf32, #tpu.memory_space<vmem>>, vector<8x1xf32>
    %c0_5 = arith.constant 0 : index
    %c0_6 = arith.constant 0 : index
    %4 = vector.load %arg4[%c0_5, %c0_6] : memref<1x16xf32, #tpu.memory_space<vmem>>, vector<1x16xf32>
    %5 = vector.broadcast %3 : vector<8x1xf32> to vector<8x16xf32>
    %6 = vector.broadcast %4 : vector<1x16xf32> to vector<8x16xf32>
    %7 = arith.mulf %5, %6 : vector<8x16xf32>
    %8 = arith.addf %2, %7 : vector<8x16xf32>
    %c0_7 = arith.constant 0 : index
    %c0_8 = arith.constant 0 : index
    %9 = vector.load %arg5[%c0_7, %c0_8] : memref<1x16xf32, #tpu.memory_space<vmem>>, vector<1x16xf32>
    %10 = vector.broadcast %9 : vector<1x16xf32> to vector<8x16xf32>
    %11 = arith.addf %8, %10 : vector<8x16xf32>
    %c0_9 = arith.constant 0 : index
    %c0_10 = arith.constant 0 : index
    %12 = vector.load %arg6[%c0_9, %c0_10] : memref<8x16xf32, #tpu.memory_space<vmem>>, vector<8x16xf32>
    tpu.vector_store %arg6[%c0_9, %c0_10], %11 {strides = array<i32>} : memref<8x16xf32, #tpu.memory_space<vmem>>, vector<8x16xf32>,
    return
  }
  func.func @transform_0(%arg0: i32) -> (i32, i32) {
    %c0_i32 = arith.constant 0 : i32
    %c0_i32_0 = arith.constant 0 : i32
    return %arg0, %c0_i32 : i32, i32
  }
  func.func @transform_1(%arg0: i32) -> (i32, i32) {
    %c0_i32 = arith.constant 0 : i32
    %c0_i32_0 = arith.constant 0 : i32
    return %arg0, %c0_i32 : i32, i32
  }
  func.func @transform_2(%arg0: i32) -> (i32, i32) {
    %c0_i32 = arith.constant 0 : i32
    %c0_i32_0 = arith.constant 0 : i32
    %c0_i32_1 = arith.constant 0 : i32
    return %c0_i32, %c0_i32_0 : i32, i32
  }
  func.func @transform_3(%arg0: i32) -> (i32, i32) {
    %c0_i32 = arith.constant 0 : i32
    %c0_i32_0 = arith.constant 0 : i32
    %c0_i32_1 = arith.constant 0 : i32
    return %c0_i32, %c0_i32_0 : i32, i32
  }
  func.func @transform_4(%arg0: i32) -> (i32, i32) {
    %c0_i32 = arith.constant 0 : i32
    %c0_i32_0 = arith.constant 0 : i32
    %c0_i32_1 = arith.constant 0 : i32
    return %c0_i32, %c0_i32_0 : i32, i32
  }
  func.func @transform_5(%arg0: i32) -> (i32, i32) {
    %c0_i32 = arith.constant 0 : i32
    %c0_i32_0 = arith.constant 0 : i32
    return %arg0, %c0_i32 : i32, i32
  }
}

</mosaic_0001>

<llo_original>
// kernel: critic_2_feature_forward.1
$region0: #{critic_2_feature_forward.1}
  #allocation0 [shape = 'u32[]', space=smem, size = 0x4, offset = 0x4, fixed_abs, tag = 'smem constant byte address 0x4 - core index']
  #allocation1 [shape = 'u32[144,128]{1,0:T(1,128)}', space=vmem, size = 0x12000, scoped, tag = 'internal scratch']
  %s0 = inlined_call_operand.vmem [shape: f32[16,32], index: 0, kind: input, shape index: {}]
  %s1 = inlined_call_operand.vmem [shape: f32[16,1], index: 1, kind: input, shape index: {}]
  %s2 = inlined_call_operand.vmem [shape: f32[32,16], index: 2, kind: input, shape index: {}]
  %s3 = inlined_call_operand.vmem [shape: f32[1,16], index: 3, kind: input, shape index: {}]
  %s4 = inlined_call_operand.vmem [shape: f32[1,16], index: 4, kind: input, shape index: {}]
  %s5 = inlined_call_operand.hbm [shape: f32[16,16], index: 5, kind: output, shape index: {}]
  %s6 = sld [smem:[#allocation0]]
  $region53: #{critic_2_feature_forward.1} parent=0
    _
  %s8 = ssub.s32 1, %s6
  %s9 = scalar_select 0, %s8, %s6
  $region1: #{critic_2_feature_forward.1} parent=0
    #allocation2 [shape = 'u8[8192]{0}', space=vmem, size = 0x2000, scoped, tag = 'output window, operand 0']
    #allocation3 [shape = 's32[2]{0}', space=sflag, size = 0x8, scoped, tag = 'scoped memory for critic_2_feature_forward.1']
    %10 = vsyncpa [#allocation3], 0
    %s11 = scalar_lea.sflag [#allocation3], 1
    %12 = vsyncpa %s11, 0
    loop: start=0, step=1, limit=4
    $region2: #{critic_2_feature_forward.1} parent=1 // loop_pre_header
      _
    $region3: #{critic_2_feature_forward.1} parent=1 // loop_header
      %s14 = sphi 0, %s18
      %p15 = scmp.ge.s32.totalorder %s14, 4
      %s24 = sphi 0, %s26
      %s27 = sphi 0, %s24
      %s28 = sphi 0, %s27
      %s44 = sphi 0, %s28
      %s50 = sphi 0, %s52
      %s53 = sphi 0, %s50
      %s54 = sphi 0, %s53
      %s70 = sphi 0, %s54
      %s74 = sphi 0, %s74
      %s76 = sphi 0, %s74
      %s77 = sphi 0, %s76
      %s91 = sphi 0, %s77
      %s95 = sphi 0, %s95
      %s97 = sphi 0, %s95
      %s98 = sphi 0, %s97
      %s112 = sphi 0, %s98
      %s116 = sphi 0, %s116
      %s118 = sphi 0, %s116
      %s119 = sphi 0, %s118
      %s133 = sphi 0, %s119
      %s139 = sphi 0, %s141
      %s142 = sphi 0, %s139
      %s143 = sphi 0, %s142
      %s159 = sphi 0, %s143
    $region4: #{critic_2_feature_forward.1} parent=1 // loop_header_branch
      %17 = sbr.rel (%p15) target = $region8
    $region5: #{critic_2_feature_forward.1} parent=1 // loop_body
      %s19 = ssub.s32 %s14, 1
      %s20 = ssub.s32 %s14, 2
      %s21 = sadd.s32 %s14, 1
      %s22 = ssub.s32 %s14, %s21
      %p23 = scmp.eq.s32.totalorder %s22, 0
      %s25 = sadd.s32 %s24, 1
      %s26 = scalar_select %p23, %s24, %s25
      %p29 = pneg %p23
      %p30 = scmp.eq.s32.totalorder %s14, 1
      %p31 = por %p29, %p30
      %p32 = scmp.ne.s32.totalorder %s24, %s27
      %p33 = scmp.eq.s32.totalorder %s14, 0
      %p34 = por %p32, %p33
      %p35 = scmp.ne.s32.totalorder %s24, %s27
      %p36 = scmp.eq.s32.totalorder %s19, 1
      %p37 = por %p35, %p36
      %p38 = scmp.ne.s32.totalorder %s27, %s28
      %p39 = scmp.eq.s32.totalorder %s19, 0
      %p40 = por %p38, %p39
      %p41 = scmp.ne.s32.totalorder %s27, %s28
      %p42 = scmp.eq.s32.totalorder %s20, 1
      %p43 = por %p41, %p42
      %p45 = scmp.ne.s32.totalorder %s28, %s44
      %p46 = scmp.eq.s32.totalorder %s20, 0
      %p47 = por %p45, %p46
      %s48 = ssub.s32 %s14, %s21
      %p49 = scmp.eq.s32.totalorder %s48, 0
      %s51 = sadd.s32 %s50, 1
      %s52 = scalar_select %p49, %s50, %s51
      %p55 = pneg %p49
      %p56 = scmp.eq.s32.totalorder %s14, 1
      %p57 = por %p55, %p56
      %p58 = scmp.ne.s32.totalorder %s50, %s53
      %p59 = scmp.eq.s32.totalorder %s14, 0
      %p60 = por %p58, %p59
      %p61 = scmp.ne.s32.totalorder %s50, %s53
      %p62 = scmp.eq.s32.totalorder %s19, 1
      %p63 = por %p61, %p62
      %p64 = scmp.ne.s32.totalorder %s53, %s54
      %p65 = scmp.eq.s32.totalorder %s19, 0
      %p66 = por %p64, %p65
      %p67 = scmp.ne.s32.totalorder %s53, %s54
      %p68 = scmp.eq.s32.totalorder %s20, 1
      %p69 = por %p67, %p68
      %p71 = scmp.ne.s32.totalorder %s54, %s70
      %p72 = scmp.eq.s32.totalorder %s20, 0
      %p73 = por %p71, %p72
      %s75 = sadd.s32 %s74, 1
      %p78 = scmp.eq.s32.totalorder %s14, 1
      %p79 = scmp.ne.s32.totalorder %s74, %s76
      %p80 = scmp.eq.s32.totalorder %s14, 0
      %p81 = por %p79, %p80
      %p82 = scmp.ne.s32.totalorder %s74, %s76
      %p83 = scmp.eq.s32.totalorder %s19, 1
      %p84 = por %p82, %p83
      %p85 = scmp.ne.s32.totalorder %s76, %s77
      %p86 = scmp.eq.s32.totalorder %s19, 0
      %p87 = por %p85, %p86
      %p88 = scmp.ne.s32.totalorder %s76, %s77
      %p89 = scmp.eq.s32.totalorder %s20, 1
      %p90 = por %p88, %p89
      %p92 = scmp.ne.s32.totalorder %s77, %s91
      %p93 = scmp.eq.s32.totalorder %s20, 0
      %p94 = por %p92, %p93
      %s96 = sadd.s32 %s95, 1
      %p99 = scmp.eq.s32.totalorder %s14, 1
      %p100 = scmp.ne.s32.totalorder %s95, %s97
      %p101 = scmp.eq.s32.totalorder %s14, 0
      %p102 = por %p100, %p101
      %p103 = scmp.ne.s32.totalorder %s95, %s97
      %p104 = scmp.eq.s32.totalorder %s19, 1
      %p105 = por %p103, %p104
      %p106 = scmp.ne.s32.totalorder %s97, %s98
      %p107 = scmp.eq.s32.totalorder %s19, 0
      %p108 = por %p106, %p107
      %p109 = scmp.ne.s32.totalorder %s97, %s98
      %p110 = scmp.eq.s32.totalorder %s20, 1
      %p111 = por %p109, %p110
      %p113 = scmp.ne.s32.totalorder %s98, %s112
      %p114 = scmp.eq.s32.totalorder %s20, 0
      %p115 = por %p113, %p114
      %s117 = sadd.s32 %s116, 1
      %p120 = scmp.eq.s32.totalorder %s14, 1
      %p121 = scmp.ne.s32.totalorder %s116, %s118
      %p122 = scmp.eq.s32.totalorder %s14, 0
      %p123 = por %p121, %p122
      %p124 = scmp.ne.s32.totalorder %s116, %s118
      %p125 = scmp.eq.s32.totalorder %s19, 1
      %p126 = por %p124, %p125
      %p127 = scmp.ne.s32.totalorder %s118, %s119
      %p128 = scmp.eq.s32.totalorder %s19, 0
      %p129 = por %p127, %p128
      %p130 = scmp.ne.s32.totalorder %s118, %s119
      %p131 = scmp.eq.s32.totalorder %s20, 1
      %p132 = por %p130, %p131
      %p134 = scmp.ne.s32.totalorder %s119, %s133
      %p135 = scmp.eq.s32.totalorder %s20, 0
      %p136 = por %p134, %p135
      %s137 = ssub.s32 %s14, %s21
      %p138 = scmp.eq.s32.totalorder %s137, 0
      %s140 = sadd.s32 %s139, 1
      %s141 = scalar_select %p138, %s139, %s140
      %p144 = pneg %p138
      %p145 = scmp.eq.s32.totalorder %s14, 1
      %p146 = por %p144, %p145
      %p147 = scmp.ne.s32.totalorder %s139, %s142
      %p148 = scmp.eq.s32.totalorder %s14, 0
      %p149 = por %p147, %p148
      %p150 = scmp.ne.s32.totalorder %s139, %s142
      %p151 = scmp.eq.s32.totalorder %s19, 1
      %p152 = por %p150, %p151
      %p153 = scmp.ne.s32.totalorder %s142, %s143
      %p154 = scmp.eq.s32.totalorder %s19, 0
      %p155 = por %p153, %p154
      %p156 = scmp.ne.s32.totalorder %s142, %s143
      %p157 = scmp.eq.s32.totalorder %s20, 1
      %p158 = por %p156, %p157
      %p160 = scmp.ne.s32.totalorder %s143, %s159
      %p161 = scmp.eq.s32.totalorder %s20, 0
      %p162 = por %p160, %p161
      %p163 = scmp.le.s32.totalorder 1, %s14
      %p164 = scmp.lt.s32.totalorder %s14, 3
      %p165 = pnand %p163, %p164
      %p166 = pneg %p165
      // Predicated region
      $region9: #{critic_2_feature_forward.1} parent=5 // pred_check
        _
      $region10: #{critic_2_feature_forward.1} parent=5 // pred_check_branch
        %168 = sbr.rel (%p165) target = $region12
      $region11: #{critic_2_feature_forward.1} parent=5 // pred_region
        %s169 = ssub.s32 %s14, 1
        // Predicated region
        $region13: #{critic_2_feature_forward.1} parent=11 // pred_check
          %p170 = pneg %p87
        $region14: #{critic_2_feature_forward.1} parent=11 // pred_check_branch
          %172 = sbr.rel (%p170) target = $region16
        $region15: #{critic_2_feature_forward.1} parent=11 // pred_region
          _
        $region16: #{critic_2_feature_forward.1} parent=11 // pred_fallthru
          _
        // Predicated region
        $region17: #{critic_2_feature_forward.1} parent=11 // pred_check
          %p173 = pneg %p108
        $region18: #{critic_2_feature_forward.1} parent=11 // pred_check_branch
          %175 = sbr.rel (%p173) target = $region20
        $region19: #{critic_2_feature_forward.1} parent=11 // pred_region
          _
        $region20: #{critic_2_feature_forward.1} parent=11 // pred_fallthru
          _
        // Predicated region
        $region21: #{critic_2_feature_forward.1} parent=11 // pred_check
          %p176 = pneg %p129
        $region22: #{critic_2_feature_forward.1} parent=11 // pred_check_branch
          %178 = sbr.rel (%p176) target = $region24
        $region23: #{critic_2_feature_forward.1} parent=11 // pred_region
          _
        $region24: #{critic_2_feature_forward.1} parent=11 // pred_fallthru
          _
      $region12: #{critic_2_feature_forward.1} parent=5 // pred_fallthru
        _
      %p179 = scmp.lt.s32.totalorder %s14, 2
      // Predicated region
      $region25: #{critic_2_feature_forward.1} parent=5 // pred_check
        %p180 = pneg %p179
      $region26: #{critic_2_feature_forward.1} parent=5 // pred_check_branch
        %182 = sbr.rel (%p180) target = $region28
      $region27: #{critic_2_feature_forward.1} parent=5 // pred_region
        // Predicated region
        $region29: #{critic_2_feature_forward.1} parent=27 // pred_check
          %p183 = pneg %p34
        $region30: #{critic_2_feature_forward.1} parent=27 // pred_check_branch
          %185 = sbr.rel (%p183) target = $region32
        $region31: #{critic_2_feature_forward.1} parent=27 // pred_region
          %p186 = scmp.lt.s32.totalorder %s14, 1
          %s187 = scalar_select %p186, %s14, 1
          %s188 = smul.addr %s187, 8
          %s189 = scalar_lea.vmem %s0, %s188
        $region32: #{critic_2_feature_forward.1} parent=27 // pred_fallthru
          _
        // Predicated region
        $region33: #{critic_2_feature_forward.1} parent=27 // pred_check
          %p190 = pneg %p60
        $region34: #{critic_2_feature_forward.1} parent=27 // pred_check_branch
          %192 = sbr.rel (%p190) target = $region36
        $region35: #{critic_2_feature_forward.1} parent=27 // pred_region
          %p193 = scmp.lt.s32.totalorder %s14, 1
          %s194 = scalar_select %p193, %s14, 1
          %s195 = smul.addr %s194, 8
          %s196 = scalar_lea.vmem %s1, %s195
        $region36: #{critic_2_feature_forward.1} parent=27 // pred_fallthru
          _
      $region28: #{critic_2_feature_forward.1} parent=5 // pred_fallthru
        _
      %p197 = scmp.le.s32.totalorder 1, %s14
      %p198 = scmp.lt.s32.totalorder %s14, 3
      %p199 = pnand %p197, %p198
      %p200 = pneg %p199
      // Predicated region
      $region37: #{critic_2_feature_forward.1} parent=5 // pred_check
        _
      $region38: #{critic_2_feature_forward.1} parent=5 // pred_check_branch
        %202 = sbr.rel (%p199) target = $region40
      $region39: #{critic_2_feature_forward.1} parent=5 // pred_region
        %s203 = ssub.s32 %s14, 1
        %p204 = scmp.lt.s32.totalorder %s19, 1
        %s205 = scalar_select %p204, %s19, 1
        %s206 = smul.addr %s205, 8
        %s207 = scalar_lea.vmem %s0, %s206
        %p208 = pneg %p40
        %p209 = pneg %p37
        %p210 = scmp.lt.s32.totalorder %s19, 1
        %s211 = scalar_select %p210, %s19, 1
        %s212 = smul.addr %s211, 8
        %s213 = scalar_lea.vmem %s1, %s212
        %p214 = pneg %p66
        %p215 = pneg %p63
        %p216 = pneg %p87
        %p217 = pneg %p84
        %p218 = pneg %p108
        %p219 = pneg %p105
        %p220 = pneg %p129
        %p221 = pneg %p126
        %p222 = pneg %p155
        %p223 = pneg %p152
        %s224 = sand.u32 %s142, 1
        %s225 = scalar_lea.sflag [#allocation3], %s224
        %s226 = sand.u32 %s142, 1
        %s227 = smul.addr %s226, 8
        %s228 = scalar_lea.vmem [#allocation2], %s227
        %p229 = scmp.lt.s32.totalorder %s19, 1
        %s230 = scalar_select %p229, %s19, 1
        %s231 = smul.addr %s230, 8
        %s232 = scalar_lea.vmem %s0, %s231
        %p233 = scmp.lt.s32.totalorder %s19, 1
        %s234 = scalar_select %p233, %s19, 1
        %s235 = smul.addr %s234, 8
        %s236 = scalar_lea.vmem %s1, %s235
        %v237 = vld [vmem:[%s232] sm:$0xff]
        %v238 = vld [vmem:[%s2] sm:$0xff]
        %v239 = vld [vmem:[%s2 + $0x8] sm:$0xff]
        %v240 = vld [vmem:[%s2 + $0x10] sm:$0xff]
        %v241 = vld [vmem:[%s2 + $0x18] sm:$0xff]
        %v242 = vld [vmem:[%s236] sm:$0xff]
        %v243 = vld [vmem:[%s3] sm:$0x1]
        %245 = vset.pattern.permute.xlu0 0
        %246 = vperm.xlu0 %245, %v242
        %v247 = vpop.permute.xlu0 %246
        %v250 = vlaneseq
        %v251 = vshrl.u32 %v250, 7
        %v252 = vsub.s32 0, %v251
        %v253 = vrot.slane %v243, %v252
        %v255 = vmul.f32 %v247, %v253
        %vm256 = vcmask 261120
        %v258 = vsel %vm256, %v237, 0
        %260 = vmatprep.subr.mxu0 0.0
        %261 = vmatpush1.msra.mxu0 0.0
        %262 = vmatprep.subr.mxu0 0.0
        %263 = vmatpush1.msra.mxu0 0.0
        %264 = vmatprep.subr.mxu0 0.0
        %265 = vmatpush1.msra.mxu0 0.0
        %266 = vmatprep.subr.mxu0 0.0
        %267 = vmatpush1.msra.mxu0 0.0
        %268 = vmatprep.subr.mxu0 0.0
        %269 = vmatpush1.msra.mxu0 0.0
        %270 = vmatprep.subr.mxu0 0.0
        %271 = vmatpush1.msra.mxu0 0.0
        %272 = vmatprep.subr.mxu0 0.0
        %273 = vmatpush1.msra.mxu0 0.0
        %274 = vmatprep.subr.mxu0 0.0
        %275 = vmatpush1.msra.mxu0 0.0
        %276 = vmatprep.subr.mxu0 0.0
        %277 = vmatpush1.msra.mxu0 0.0
        %278 = vmatprep.subr.mxu0 0.0
        %279 = vmatpush1.msra.mxu0 0.0
        %280 = vmatprep.subr.mxu0 0.0
        %281 = vmatpush1.msra.mxu0 0.0
        %282 = vmatprep.subr.mxu0 0.0
        %283 = vmatpush1.msra.mxu0 0.0
        %284 = vmatprep.subr.mxu0 0.0
        %285 = vmatpush1.msra.mxu0 %v241
        %286 = vmatprep.subr.mxu0 0.0
        %287 = vmatpush1.msra.mxu0 %v240
        %288 = vmatprep.subr.mxu0 0.0
        %289 = vmatpush1.msra.mxu0 %v239
        %290 = vmatprep.subr.mxu0 0.0
        %291 = vmatpush1.msra.mxu0 %v238
        %292 = vmatprep.subr.mxu0 0.0
        %293 = vmatpush2.msra.mxu0 0.0
        %294 = vmatprep.subr.mxu0 0.0
        %295 = vmatpush2.msra.mxu0 0.0
        %296 = vmatprep.subr.mxu0 0.0
        %297 = vmatpush2.msra.mxu0 0.0
        %298 = vmatprep.subr.mxu0 0.0
        %299 = vmatpush2.msra.mxu0 0.0
        %300 = vmatprep.subr.mxu0 0.0
        %301 = vmatpush2.msra.mxu0 0.0
        %302 = vmatprep.subr.mxu0 0.0
        %303 = vmatpush2.msra.mxu0 0.0
        %304 = vmatprep.subr.mxu0 0.0
        %305 = vmatpush2.msra.mxu0 0.0
        %306 = vmatprep.subr.mxu0 0.0
        %307 = vmatpush2.msra.mxu0 0.0
        %308 = vmatprep.subr.mxu0 0.0
        %309 = vmatpush2.msra.mxu0 0.0
        %310 = vmatprep.subr.mxu0 0.0
        %311 = vmatpush2.msra.mxu0 0.0
        %312 = vmatprep.subr.mxu0 0.0
        %313 = vmatpush2.msra.mxu0 0.0
        %314 = vmatprep.subr.mxu0 0.0
        %315 = vmatpush2.msra.mxu0 0.0
        %316 = vmatprep.subr.mxu0 0.0
        %317 = vmatpush2.msra.mxu0 0.0
        %318 = vmatprep.subr.mxu0 0.0
        %319 = vmatpush2.msra.mxu0 0.0
        %320 = vmatprep.subr.mxu0 0.0
        %321 = vmatpush2.msra.mxu0 0.0
        %322 = vmatprep.subr.mxu0 0.0
        %323 = vmatpush2.msra.mxu0 0.0
        %324 = vmatprep.mubr.f32.mxu0 0.0
        %325 = vmatmul.mubr.f32.gmra.mxu0 %v258
        %v326 = vpop.f32.mrf.mxu0
        %v327 = vadd.f32 %v255, %v326
        %v328 = vpop.f32.mrf.mxu0
        %329 = vdwg.mxu0
        %v330 = vld [vmem:[%s4] sm:$0x1]
        %v332 = vlaneseq
        %v333 = vshrl.u32 %v332, 7
        %v334 = vsub.s32 0, %v333
        %v335 = vrot.slane %v330, %v334
        %v337 = vadd.f32 %v327, %v335
        %vm338 = vcmask 130048
        %339 = vst.msk [vmem:[%s228] sm:$0xff] %vm338, %v337
        %s340 = sand.u32 %s142, 1
        %s341 = scalar_lea.sflag [#allocation3], %s340
        %s342 = sand.u32 %s142, 1
        %s343 = smul.addr %s342, 8
        %s344 = scalar_lea.vmem [#allocation2], %s343
        // Predicated region
        $region41: #{critic_2_feature_forward.1} parent=39 // pred_check
          %p345 = pneg %p152
        $region42: #{critic_2_feature_forward.1} parent=39 // pred_check_branch
          %347 = sbr.rel (%p345) target = $region44
        $region43: #{critic_2_feature_forward.1} parent=39 // pred_region
          %s349 = ssub.s32 128, 128
          %350 = vsyncadd %s341, %s349
          %s351 = smul.addr %s19, 128
          %s352 = scalar_lea.hbm %s5, %s351
          %s354 = sshll.u32 %s344, 4
          %s355 = int_to_ptr.vmem [resolvable:$true] %s354
          %357 = dma.vmem_to_hbm [thread:$0]  %s355, 128, %s352, %s341
        $region44: #{critic_2_feature_forward.1} parent=39 // pred_fallthru
          _
      $region40: #{critic_2_feature_forward.1} parent=5 // pred_fallthru
        _
      %p358 = scmp.le.s32.totalorder 2, %s14
      // Predicated region
      $region45: #{critic_2_feature_forward.1} parent=5 // pred_check
        %p359 = pneg %p358
      $region46: #{critic_2_feature_forward.1} parent=5 // pred_check_branch
        %361 = sbr.rel (%p359) target = $region48
      $region47: #{critic_2_feature_forward.1} parent=5 // pred_region
        %s362 = ssub.s32 %s14, 2
        // Predicated region
        $region49: #{critic_2_feature_forward.1} parent=47 // pred_check
          %p363 = pneg %p158
        $region50: #{critic_2_feature_forward.1} parent=47 // pred_check_branch
          %365 = sbr.rel (%p363) target = $region52
        $region51: #{critic_2_feature_forward.1} parent=47 // pred_region
          %s366 = sand.u32 %s143, 1
          %s367 = scalar_lea.sflag [#allocation3], %s366
          %s368 = sand.u32 %s143, 1
          %s369 = smul.addr %s368, 8
          %s370 = scalar_lea.vmem [#allocation2], %s369
          %371 = dma.done %s367, 128
        $region52: #{critic_2_feature_forward.1} parent=47 // pred_fallthru
          _
      $region48: #{critic_2_feature_forward.1} parent=5 // pred_fallthru
        _
    $region6: #{critic_2_feature_forward.1} parent=1 // loop_footer
      %s18 = sadd.s32 1, %s14
    $region7: #{critic_2_feature_forward.1} parent=1 // loop_footer_branch
      %13 = sbr.rel target = $region3
    $region8: #{critic_2_feature_forward.1} parent=1 // loop_exit
      _
    %372 = vsyncpa [#allocation3], 1
    %s373 = scalar_lea.sflag [#allocation3], 1
    %374 = vsyncpa %s373, 1

</llo_original>
